<compile_context>
chip_gen: v5e
topology: v5e:2x2
jax: 0.10.0
libtpu: 0.0.40
codegen_flags: <defaults>
</compile_context>

<pallas_src>
import functools
import math

import jax
import jax.numpy as jnp
from jax.experimental import pallas as pl
from jax.experimental.pallas import tpu as pltpu

_MIB = 1024 * 1024


def _round_up(a, b):
    return (a + b - 1) // b * b


# ---------------------------------------------------------------------------
# Shared epilogue: support -> Linear -> ReLU -> Linear (-> optional ReLU).
# ---------------------------------------------------------------------------
def _mlp_epilogue(support_f32, w1_ref, b1_ref, w2_ref, b2_ref, out_ref,
                  apply_out_relu):
    h = jnp.dot(support_f32.astype(jnp.bfloat16), w1_ref[...],
                preferred_element_type=jnp.float32) + b1_ref[...]
    h = jnp.maximum(h, 0.0)
    o = jnp.dot(h.astype(jnp.bfloat16), w2_ref[...],
                preferred_element_type=jnp.float32) + b2_ref[...]
    if apply_out_relu:
        o = jnp.maximum(o, 0.0)            # between-layer ReLU (use_relu=True)
    out_ref[...] = o.astype(out_ref.dtype)


# ---------------------------------------------------------------------------
# Tiled GIN layer, x VMEM-resident.
# grid = (rows_pad // tm, cols_pad // tk); reduction (adj columns) axis last.
# ---------------------------------------------------------------------------
def _gin_layer_kernel_resident(
    eps_ref,                  # SMEM (1,) f32
    adj_ref,                  # VMEM [TM, TK] int8 (or bf16) tile (i, k) of adj
    x_ref,                    # VMEM [Nx, Fin] bf16 (resident, constant index_map)
    w1_ref, b1_ref,           # VMEM [Fin, H] bf16, [1, H] f32
    w2_ref, b2_ref,           # VMEM [H, Fout] bf16, [1, Fout] f32
    out_ref,                  # VMEM [TM, Fout]
    acc_ref,                  # VMEM scratch [TM, Fin] f32
    *, tm, tk, apply_out_relu,
):
    i = pl.program_id(0)
    k = pl.program_id(1)

    @pl.when(k == 0)
    def _init():
        acc_ref[...] = jnp.zeros_like(acc_ref)

    # Neighbourhood aggregation: adj tile is 0/1 int8 in HBM; VPU cast to bf16
    # is free filler in this HBM-bound loop.
    col0 = pl.multiple_of(k * tk, 128)
    xk = x_ref[pl.ds(col0, tk), :]
    acc_ref[...] += jnp.dot(adj_ref[...].astype(jnp.bfloat16), xk,
                            preferred_element_type=jnp.float32)

    @pl.when(k == pl.num_programs(1) - 1)
    def _finalize():
        row0 = pl.multiple_of(i * tm, 128)
        xi = x_ref[pl.ds(row0, tm), :].astype(jnp.float32)
        support = acc_ref[...] + (1.0 + eps_ref[0]) * xi
        _mlp_epilogue(support, w1_ref, b1_ref, w2_ref, b2_ref, out_ref,
                      apply_out_relu)


# ---------------------------------------------------------------------------
# Tiled GIN layer, x streamed (fallback when N*Fin is too large to keep x
# resident, e.g. very wide raw features on very large graphs).
# ---------------------------------------------------------------------------
def _gin_layer_kernel_streamed(
    eps_ref, adj_ref, xk_ref, xi_ref, w1_ref, b1_ref, w2_ref, b2_ref,
    out_ref, acc_ref, *, apply_out_relu,
):
    k = pl.program_id(1)

    @pl.when(k == 0)
    def _init():
        acc_ref[...] = jnp.zeros_like(acc_ref)

    acc_ref[...] += jnp.dot(adj_ref[...].astype(jnp.bfloat16), xk_ref[...],
                            preferred_element_type=jnp.float32)

    @pl.when(k == pl.num_programs(1) - 1)
    def _finalize():
        support = acc_ref[...] + (1.0 + eps_ref[0]) * xi_ref[...].astype(jnp.float32)
        _mlp_epilogue(support, w1_ref, b1_ref, w2_ref, b2_ref, out_ref,
                      apply_out_relu)


# ---------------------------------------------------------------------------
# Fully fused kernel (both GIN layers in one call) for VMEM-sized graphs:
# adj is read from HBM exactly once, h never round-trips HBM.
# ---------------------------------------------------------------------------
def _gin_fused_kernel(
    eps1_ref, eps2_ref,       # SMEM (1,) f32 each
    adj_ref,                  # VMEM [Np, Np] int8 (or bf16)
    x_ref,                    # VMEM [Np, Fin] bf16
    w1a_ref, b1a_ref, w1b_ref, b1b_ref,
    w2a_ref, b2a_ref, w2b_ref, b2b_ref,
    out_ref,                  # VMEM [Np, Fout] f32
    *, apply_mid_relu,
):
    adj_bf = adj_ref[...].astype(jnp.bfloat16)
    x = x_ref[...]

    # ---- GIN layer 1 ----
    sup1 = (jnp.dot(adj_bf, x, preferred_element_type=jnp.float32)
            + (1.0 + eps1_ref[0]) * x.astype(jnp.float32))
    h = jnp.dot(sup1.astype(jnp.bfloat16), w1a_ref[...],
                preferred_element_type=jnp.float32) + b1a_ref[...]
    h = jnp.maximum(h, 0.0)
    h = jnp.dot(h.astype(jnp.bfloat16), w1b_ref[...],
                preferred_element_type=jnp.float32) + b1b_ref[...]
    if apply_mid_relu:
        h = jnp.maximum(h, 0.0)
    # TODO(synk): F.dropout is identity in eval mode; training-mode dropout
    # would use pltpu.prng_seed + pltpu.prng_random_bits here.
    h_bf = h.astype(jnp.bfloat16)

    # ---- GIN layer 2 ----
    sup2 = (jnp.dot(adj_bf, h_bf, preferred_element_type=jnp.float32)
            + (1.0 + eps2_ref[0]) * h_bf.astype(jnp.float32))
    z = jnp.dot(sup2.astype(jnp.bfloat16), w2a_ref[...],
                preferred_element_type=jnp.float32) + b2a_ref[...]
    z = jnp.maximum(z, 0.0)
    o = jnp.dot(z.astype(jnp.bfloat16), w2b_ref[...],
                preferred_element_type=jnp.float32) + b2b_ref[...]
    out_ref[...] = o.astype(out_ref.dtype)


# ---------------------------------------------------------------------------
# VMEM footprint estimates (assume 2 pipeline buffers per BlockSpec'd operand).
# ---------------------------------------------------------------------------
def _vmem_estimate_tiled(tm, tk, n_x, fin, fhid, fout, out_bytes, x_resident,
                         adj_bytes):
    est = 2 * tm * tk * adj_bytes                          # adj tile (double-buffered)
    if x_resident:
        est += 2 * n_x * fin * 2                           # resident x
    else:
        est += 2 * tk * fin * 2 + 2 * tm * fin * 2         # xk + xi tiles
    est += 2 * (fin * fhid * 2 + fhid * 4 + fhid * fout * 2 + fout * 4)  # weights
    est += 2 * tm * fout * out_bytes                       # output tile
    est += tm * fin * 4                                    # f32 accumulator scratch
    return est


def _vmem_estimate_fused(n_pad, fin, fhid, fout, adj_bytes):
    est = 2 * n_pad * n_pad * adj_bytes                    # adj
    est += 2 * n_pad * n_pad                               # in-kernel bf16 copy of adj
    est += 2 * n_pad * fin * 2                             # x
    est += 2 * n_pad * max(fin, fhid) * 4                  # support / h f32 temporaries
    est += 2 * (fin * fhid + fhid * fhid + fhid * fout + fout * fout) * 2
    est += 2 * n_pad * fout * 4                            # output
    return est


def _vmem_limit(est):
    # Derived from footprint; cap at 64 MiB so the same limit is safe on v7x.
    return int(min(max(est + 8 * _MIB, 32 * _MIB), 64 * _MIB))


# ---------------------------------------------------------------------------
# One GIN layer as a pallas_call.
# ---------------------------------------------------------------------------
def _gin_layer(adj_q, x_bf, eps, w1_bf, b1, w2_bf, b2, *,
               apply_out_relu, out_dtype, tm, tk, x_resident, vmem_limit):
    rows_pad, cols_pad = adj_q.shape
    n_x, fin = x_bf.shape
    fhid = w1_bf.shape[1]
    fout = w2_bf.shape[1]
    grid = (rows_pad // tm, cols_pad // tk)

    smem = pl.BlockSpec(memory_space=pltpu.MemorySpace.SMEM)
    adj_spec = pl.BlockSpec((tm, tk), lambda i, k: (i, k))
    w_specs = [
        pl.BlockSpec((fin, fhid), lambda i, k: (0, 0)),    # w1 (VMEM-resident)
        pl.BlockSpec((1, fhid), lambda i, k: (0, 0)),      # b1
        pl.BlockSpec((fhid, fout), lambda i, k: (0, 0)),   # w2
        pl.BlockSpec((1, fout), lambda i, k: (0, 0)),      # b2
    ]
    # TODO(synk): when pipeline_mode=pl.Buffered(1) is fully supported for
    # pallas_call BlockSpecs, use it on the constant-index_map operands to drop
    # their duplicate pipeline buffer (matters for very wide Fin on v7x).

    if x_resident:
        kernel = functools.partial(_gin_layer_kernel_resident, tm=tm, tk=tk,
                                   apply_out_relu=apply_out_relu)
        in_specs = [smem, adj_spec,
                    pl.BlockSpec((n_x, fin), lambda i, k: (0, 0))] + w_specs
        args = (eps, adj_q, x_bf, w1_bf, b1, w2_bf, b2)
        x_read_bytes = n_x * fin * 2
    else:
        kernel = functools.partial(_gin_layer_kernel_streamed,
                                   apply_out_relu=apply_out_relu)
        in_specs = [smem, adj_spec,
                    pl.BlockSpec((tk, fin), lambda i, k: (k, 0)),
                    pl.BlockSpec((tm, fin), lambda i, k: (i, 0))] + w_specs
        args = (eps, adj_q, x_bf, x_bf, w1_bf, b1, w2_bf, b2)
        x_read_bytes = (grid[0] * cols_pad + rows_pad) * fin * 2

    flops = (2 * rows_pad * cols_pad * fin
             + 2 * rows_pad * fin * fhid
             + 2 * rows_pad * fhid * fout)
    bytes_accessed = (adj_q.size * adj_q.dtype.itemsize
                      + x_read_bytes
                      + w1_bf.size * 2 + w2_bf.size * 2 + b1.size * 4 + b2.size * 4
                      + rows_pad * fout * jnp.dtype(out_dtype).itemsize)

    return pl.pallas_call(
        kernel,
        out_shape=jax.ShapeDtypeStruct((rows_pad, fout), out_dtype),
        grid_spec=pltpu.PrefetchScalarGridSpec(
            num_scalar_prefetch=0,
            grid=grid,
            in_specs=in_specs,
            out_specs=pl.BlockSpec((tm, fout), lambda i, k: (i, 0)),
            scratch_shapes=[pltpu.VMEM((tm, fin), jnp.float32)],
        ),
        compiler_params=pltpu.CompilerParams(
            dimension_semantics=("parallel", "arbitrary"),
            vmem_limit_bytes=vmem_limit,
        ),
        cost_estimate=pl.CostEstimate(
            flops=int(flops), transcendentals=0,
            bytes_accessed=int(bytes_accessed)),
    )(*args)


def _forward_fused(x_bf, adj_q, p_pad, eps1, eps2, *, use_relu, vmem_limit):
    n_pad, fin = x_bf.shape
    fhid = p_pad["w1a"].shape[1]
    fout = p_pad["w2b"].shape[1]

    smem = pl.BlockSpec(memory_space=pltpu.MemorySpace.SMEM)

    def full(shape):
        return pl.BlockSpec(shape, lambda i: (0,) * len(shape))

    flops = (2 * n_pad * n_pad * (fin + fhid)
             + 2 * n_pad * (fin * fhid + fhid * fhid + fhid * fout + fout * fout))
    bytes_accessed = (adj_q.size * adj_q.dtype.itemsize + x_bf.size * 2
                      + sum(int(v.size) * v.dtype.itemsize for v in p_pad.values())
                      + n_pad * fout * 4)

    kernel = functools.partial(_gin_fused_kernel, apply_mid_relu=use_relu)
    return pl.pallas_call(
        kernel,
        out_shape=jax.ShapeDtypeStruct((n_pad, fout), jnp.float32),
        grid_spec=pltpu.PrefetchScalarGridSpec(
            num_scalar_prefetch=0,
            grid=(1,),
            in_specs=[smem, smem,
                      full((n_pad, n_pad)), full((n_pad, fin)),
                      full((fin, fhid)), full((1, fhid)),
                      full((fhid, fhid)), full((1, fhid)),
                      full((fhid, fout)), full((1, fout)),
                      full((fout, fout)), full((1, fout))],
            out_specs=full((n_pad, fout)),
        ),
        compiler_params=pltpu.CompilerParams(
            dimension_semantics=("arbitrary",),
            vmem_limit_bytes=vmem_limit,
        ),
        cost_estimate=pl.CostEstimate(
            flops=int(flops), transcendentals=0,
            bytes_accessed=int(bytes_accessed)),
    )(eps1, eps2, adj_q, x_bf,
      p_pad["w1a"], p_pad["b1a"], p_pad["w1b"], p_pad["b1b"],
      p_pad["w2a"], p_pad["b2a"], p_pad["w2b"], p_pad["b2b"])


# ---------------------------------------------------------------------------
# Top-level forward (eval mode: dropout is identity).
# mode: None (auto) | "fused" | "tiled" (resident x) | "streamed".
# ---------------------------------------------------------------------------
def gin_classifier_forward(x, adj, params, *, use_relu=True, tm=512, tk=1024,
                           mode=None, assume_binary_adj=True,
                           fuse_vmem_budget=28 * _MIB,
                           resident_x_budget=40 * _MIB):
    n, nfeat = x.shape
    nhid = params["w1a"].shape[1]
    nclass = params["w2b"].shape[1]

    fin = _round_up(nfeat, 128)
    fhid = _round_up(nhid, 128)
    fout = _round_up(nclass, 128)

    f32, bf16 = jnp.float32, jnp.bfloat16
    # adj is 0/1 -> store it in HBM at 1 byte/element, cast to bf16 on-chip.
    adj_dtype = jnp.int8 if assume_binary_adj else bf16
    adj_bytes = jnp.dtype(adj_dtype).itemsize

    def pad_w(w, r, c):
        return jnp.pad(w, ((0, r - w.shape[0]), (0, c - w.shape[1])))

    w1a = pad_w(params["w1a"], fin, fhid).astype(bf16)
    b1a = pad_w(params["b1a"], 1, fhid).astype(f32)
    w1b = pad_w(params["w1b"], fhid, fhid).astype(bf16)
    b1b = pad_w(params["b1b"], 1, fhid).astype(f32)
    w2a = pad_w(params["w2a"], fhid, fout).astype(bf16)
    b2a = pad_w(params["b2a"], 1, fout).astype(f32)
    w2b = pad_w(params["w2b"], fout, fout).astype(bf16)
    b2b = pad_w(params["b2b"], 1, fout).astype(f32)
    eps1 = params["eps1"].astype(f32)
    eps2 = params["eps2"].astype(f32)

    n128 = _round_up(n, 128)

    # ---- fully fused path: whole problem resident in VMEM, adj read once ----
    fused_est = _vmem_estimate_fused(n128, fin, fhid, fout, adj_bytes)
    if mode == "fused" or (mode is None and fused_est <= fuse_vmem_budget):
        adj_q = jnp.pad(adj.astype(f32),
                        ((0, n128 - n), (0, n128 - n))).astype(adj_dtype)
        x_bf = jnp.pad(x.astype(f32), ((0, n128 - n), (0, fin - nfeat))).astype(bf16)
        p_pad = {"w1a": w1a, "b1a": b1a, "w1b": w1b, "b1b": b1b,
                 "w2a": w2a, "b2a": b2a, "w2b": w2b, "b2b": b2b}
        logits = _forward_fused(x_bf, adj_q, p_pad, eps1, eps2,
                                use_relu=use_relu,
                                vmem_limit=_vmem_limit(fused_est))
        return logits[:n, :nclass]

    # ---- tiled path: one pallas_call per GIN layer (layer 2 needs all rows of h)
    # Tile sizing: multiples of 128, tm | tk, clamped to the padded node count.
    tm = max(128, _round_up(tm, 128))
    tk = max(128, _round_up(tk, 128))
    tk = min(tk, n128)
    tm = min(tm, tk)
    if tk % tm:
        tm = math.gcd(tm, tk)            # both multiples of 128 -> gcd >= 128
    rows_pad = _round_up(n, tm)
    if rows_pad // tm < 2 and rows_pad > 128:
        # keep >=2 row blocks so the "parallel" axis can use both v7x TensorCores
        tm = max(128, tm // 2)
        rows_pad = _round_up(n, tm)
    cols_pad = _round_up(n, tk)          # tm | tk  =>  rows_pad <= cols_pad
    n_x = cols_pad                       # x rows cover both row & column windows

    est_resident = max(
        _vmem_estimate_tiled(tm, tk, n_x, fin, fhid, fhid, 2, True, adj_bytes),
        _vmem_estimate_tiled(tm, tk, n_x, fhid, fhid, fout, 4, True, adj_bytes))
    if mode == "streamed":
        x_resident = False
    elif mode == "tiled":
        x_resident = True
    else:
        x_resident = est_resident <= resident_x_budget
    est = est_resident if x_resident else max(
        _vmem_estimate_tiled(tm, tk, n_x, fin, fhid, fhid, 2, False, adj_bytes),
        _vmem_estimate_tiled(tm, tk, n_x, fhid, fhid, fout, 4, False, adj_bytes))
    vmem_limit = _vmem_limit(est)

    adj_q = jnp.pad(adj.astype(f32),
                    ((0, rows_pad - n), (0, cols_pad - n))).astype(adj_dtype)
    x_bf = jnp.pad(x.astype(f32), ((0, n_x - n), (0, fin - nfeat))).astype(bf16)

    # GIN layer 1 (+ between-layer ReLU); output kept bf16 for layer 2's MXU.
    h_bf = _gin_layer(adj_q, x_bf, eps1, w1a, b1a, w1b, b1b,
                      apply_out_relu=use_relu, out_dtype=bf16,
                      tm=tm, tk=tk, x_resident=x_resident, vmem_limit=vmem_limit)
    # TODO(synk): F.dropout is identity in eval mode; training-mode dropout
    # would use pltpu.prng_seed + pltpu.prng_random_bits inside the kernels.
    # Layer-2's x needs cols_pad rows (extra rows hit zero adj columns only).
    h_bf = jnp.pad(h_bf, ((0, n_x - rows_pad), (0, 0)))

    # GIN layer 2 -> f32 logits.
    logits = _gin_layer(adj_q, h_bf, eps2, w2a, b2a, w2b, b2b,
                        apply_out_relu=False, out_dtype=f32,
                        tm=tm, tk=tk, x_resident=x_resident, vmem_limit=vmem_limit)
    return logits[:n, :nclass]


# ---------------------------------------------------------------------------
# Parameter init (matches GINConv.init) and a pure-JAX reference.
# ---------------------------------------------------------------------------
def init_linear(key, in_features, out_features):
    """uniform(-stdv, stdv), stdv = 1/sqrt(in_features); weight as [in, out]."""
    stdv = 1.0 / math.sqrt(in_features)
    kw, kb = jax.random.split(key)
    w = jax.random.uniform(kw, (in_features, out_features), jnp.float32, -stdv, stdv)
    b = jax.random.uniform(kb, (1, out_features), jnp.float32, -stdv, stdv)
    return w, b


def make_params(key, nfeat, nhid, nclass):
    k1, k2, k3, k4 = jax.random.split(key, 4)
    w1a, b1a = init_linear(k1, nfeat, nhid)     # gin1.mlp[0]
    w1b, b1b = init_linear(k2, nhid, nhid)      # gin1.mlp[2]
    w2a, b2a = init_linear(k3, nhid, nclass)    # gin2.mlp[0]
    w2b, b2b = init_linear(k4, nclass, nclass)  # gin2.mlp[2]
    return {
        "eps1": jnp.zeros((1,), jnp.float32),   # eps init 0, not trained
        "eps2": jnp.zeros((1,), jnp.float32),
        "w1a": w1a, "b1a": b1a, "w1b": w1b, "b1b": b1b,
        "w2a": w2a, "b2a": b2a, "w2b": w2b, "b2b": b2b,
    }


def reference_forward(x, adj, p, use_relu=True):
    """Pure-JAX reference (eval mode), mirroring the kernels' numerics policy."""
    bf16, f32 = jnp.bfloat16, jnp.float32
    adj_b = adj.astype(bf16)

    def layer(xb, eps, w1, b1, w2, b2, relu_out):
        support = (jnp.dot(adj_b, xb, preferred_element_type=f32)
                   + (1.0 + eps) * xb.astype(f32))
        h = jnp.dot(support.astype(bf16), w1.astype(bf16),
                    preferred_element_type=f32) + b1
        h = jnp.maximum(h, 0.0)
        o = jnp.dot(h.astype(bf16), w2.astype(bf16),
                    preferred_element_type=f32) + b2
        return jnp.maximum(o, 0.0) if relu_out else o

    h = layer(x.astype(bf16), p["eps1"][0], p["w1a"], p["b1a"],
              p["w1b"], p["b1b"], use_relu).astype(bf16)
    return layer(h, p["eps2"][0], p["w2a"], p["b2a"], p["w2b"], p["b2b"], False)


if __name__ == "__main__":
    N, nfeat, nhid, nclass = 16, 32, 32, 8

    key = jax.random.PRNGKey(0)
    kx, kadj, kp = jax.random.split(key, 3)

    x = jax.random.normal(kx, (N, nfeat), jnp.float32)
    # symmetric dense 0/1 adjacency with self-loops
    a = (jax.random.uniform(kadj, (N, N)) > 0.7).astype(jnp.float32)
    adj = jnp.clip(a + a.T + jnp.eye(N, dtype=jnp.float32), 0.0, 1.0)

    params = make_params(kp, nfeat, nhid, nclass)
    ref = reference_forward(x, adj, params)

    # Auto dispatch picks the fused path at this size; also exercise both tiled
    # kernels (resident-x and streamed-x) explicitly on the same inputs.
    for mode in (None, "tiled", "streamed"):
        out = jax.block_until_ready(
            gin_classifier_forward(x, adj, params, mode=mode))
        assert out.shape == (N, nclass)
        max_err = float(jnp.max(jnp.abs(out - ref)))
        assert jnp.allclose(out, ref, atol=1e-2, rtol=1e-2), (
            f"mode={mode}: mismatch vs reference, max abs err {max_err:.3e}")

    print("KERNEL_OK")
</pallas_src>

<mosaic_0001>
module attributes {stable_mosaic.version = 11 : i64} {
  func.func @_gin_fused_kernel(%arg0: i32, %arg1: memref<1xf32, #tpu.memory_space<smem>>, %arg2: memref<1xf32, #tpu.memory_space<smem>>, %arg3: memref<128x128xi8, #tpu.memory_space<vmem>>, %arg4: memref<128x128xbf16, #tpu.memory_space<vmem>>, %arg5: memref<128x128xbf16, #tpu.memory_space<vmem>>, %arg6: memref<1x128xf32, #tpu.memory_space<vmem>>, %arg7: memref<128x128xbf16, #tpu.memory_space<vmem>>, %arg8: memref<1x128xf32, #tpu.memory_space<vmem>>, %arg9: memref<128x128xbf16, #tpu.memory_space<vmem>>, %arg10: memref<1x128xf32, #tpu.memory_space<vmem>>, %arg11: memref<128x128xbf16, #tpu.memory_space<vmem>>, %arg12: memref<1x128xf32, #tpu.memory_space<vmem>>, %arg13: memref<128x128xf32, #tpu.memory_space<vmem>>) attributes {dimension_semantics = [#tpu.dimension_semantics<arbitrary>], iteration_bounds = array<i64: 1>, scalar_prefetch = 0 : i64, scratch_operands = 0 : i64, tpu.core_type = #tpu.core_type<tc>, window_params = [{transform_indices = @transform_0, window_bounds = array<i64: 1>}, {transform_indices = @transform_1, window_bounds = array<i64: 1>}, {pipeline_mode = #tpu.pipeline_mode<synchronous>, transform_indices = @transform_2, window_bounds = array<i64: 128, 128>}, {pipeline_mode = #tpu.pipeline_mode<synchronous>, transform_indices = @transform_3, window_bounds = array<i64: 128, 128>}, {pipeline_mode = #tpu.pipeline_mode<synchronous>, transform_indices = @transform_4, window_bounds = array<i64: 128, 128>}, {pipeline_mode = #tpu.pipeline_mode<synchronous>, transform_indices = @transform_5, window_bounds = array<i64: 1, 128>}, {pipeline_mode = #tpu.pipeline_mode<synchronous>, transform_indices = @transform_6, window_bounds = array<i64: 128, 128>}, {pipeline_mode = #tpu.pipeline_mode<synchronous>, transform_indices = @transform_7, window_bounds = array<i64: 1, 128>}, {pipeline_mode = #tpu.pipeline_mode<synchronous>, transform_indices = @transform_8, window_bounds = array<i64: 128, 128>}, {pipeline_mode = #tpu.pipeline_mode<synchronous>, transform_indices = @transform_9, window_bounds = array<i64: 1, 128>}, {pipeline_mode = #tpu.pipeline_mode<synchronous>, transform_indices = @transform_10, window_bounds = array<i64: 128, 128>}, {pipeline_mode = #tpu.pipeline_mode<synchronous>, transform_indices = @transform_11, window_bounds = array<i64: 1, 128>}, {pipeline_mode = #tpu.pipeline_mode<synchronous>, transform_indices = @transform_12, window_bounds = array<i64: 128, 128>}]} {
    %c0 = arith.constant 0 : index
    %c0_0 = arith.constant 0 : index
    %0 = vector.load %arg3[%c0, %c0_0] : memref<128x128xi8, #tpu.memory_space<vmem>>, vector<128x128xi8>
    %1 = arith.sitofp %0 : vector<128x128xi8> to vector<128x128xbf16>
    %c0_1 = arith.constant 0 : index
    %c0_2 = arith.constant 0 : index
    %2 = vector.load %arg4[%c0_1, %c0_2] : memref<128x128xbf16, #tpu.memory_space<vmem>>, vector<128x128xbf16>
    %cst = arith.constant dense<0.000000e+00> : vector<128x128xf32>
    %3 = tpu.matmul %1, %2, %cst {dimension_numbers = #tpu.dot_dimension_numbers<[1], [0], [0], [1], [0, 0, 1, 1], [], []>} : vector<128x128xbf16>, vector<128x128xbf16>, vector<128x128xf32> -> vector<128x128xf32>
    %c0_3 = arith.constant 0 : index
    %4 = memref.load %arg1[%c0_3] : memref<1xf32, #tpu.memory_space<smem>>
    %cst_4 = arith.constant 1.000000e+00 : f32
    %5 = arith.addf %cst_4, %4 : f32
    %6 = arith.extf %2 : vector<128x128xbf16> to vector<128x128xf32>
    %7 = vector.broadcast %5 : f32 to vector<128x128xf32>
    %8 = arith.mulf %7, %6 : vector<128x128xf32>
    %9 = arith.addf %3, %8 : vector<128x128xf32>
    %10 = arith.truncf %9 : vector<128x128xf32> to vector<128x128xbf16>
    %c0_5 = arith.constant 0 : index
    %c0_6 = arith.constant 0 : index
    %11 = vector.load %arg5[%c0_5, %c0_6] : memref<128x128xbf16, #tpu.memory_space<vmem>>, vector<128x128xbf16>
    %cst_7 = arith.constant dense<0.000000e+00> : vector<128x128xf32>
    %12 = tpu.matmul %10, %11, %cst_7 {dimension_numbers = #tpu.dot_dimension_numbers<[1], [0], [0], [1], [0, 0, 1, 1], [], []>} : vector<128x128xbf16>, vector<128x128xbf16>, vector<128x128xf32> -> vector<128x128xf32>
    %c0_8 = arith.constant 0 : index
    %c0_9 = arith.constant 0 : index
    %13 = vector.load %arg6[%c0_8, %c0_9] : memref<1x128xf32, #tpu.memory_space<vmem>>, vector<1x128xf32>
    %14 = vector.broadcast %13 : vector<1x128xf32> to vector<128x128xf32>
    %15 = arith.addf %12, %14 : vector<128x128xf32>
    %cst_10 = arith.constant 0.000000e+00 : f32
    %16 = vector.broadcast %cst_10 : f32 to vector<128x128xf32>
    %17 = arith.maximumf %15, %16 : vector<128x128xf32>
    %18 = arith.truncf %17 : vector<128x128xf32> to vector<128x128xbf16>
    %c0_11 = arith.constant 0 : index
    %c0_12 = arith.constant 0 : index
    %19 = vector.load %arg7[%c0_11, %c0_12] : memref<128x128xbf16, #tpu.memory_space<vmem>>, vector<128x128xbf16>
    %cst_13 = arith.constant dense<0.000000e+00> : vector<128x128xf32>
    %20 = tpu.matmul %18, %19, %cst_13 {dimension_numbers = #tpu.dot_dimension_numbers<[1], [0], [0], [1], [0, 0, 1, 1], [], []>} : vector<128x128xbf16>, vector<128x128xbf16>, vector<128x128xf32> -> vector<128x128xf32>
    %c0_14 = arith.constant 0 : index
    %c0_15 = arith.constant 0 : index
    %21 = vector.load %arg8[%c0_14, %c0_15] : memref<1x128xf32, #tpu.memory_space<vmem>>, vector<1x128xf32>
    %22 = vector.broadcast %21 : vector<1x128xf32> to vector<128x128xf32>
    %23 = arith.addf %20, %22 : vector<128x128xf32>
    %cst_16 = arith.constant 0.000000e+00 : f32
    %24 = vector.broadcast %cst_16 : f32 to vector<128x128xf32>
    %25 = arith.maximumf %23, %24 : vector<128x128xf32>
    %26 = arith.truncf %25 : vector<128x128xf32> to vector<128x128xbf16>
    %cst_17 = arith.constant dense<0.000000e+00> : vector<128x128xf32>
    %27 = tpu.matmul %1, %26, %cst_17 {dimension_numbers = #tpu.dot_dimension_numbers<[1], [0], [0], [1], [0, 0, 1, 1], [], []>} : vector<128x128xbf16>, vector<128x128xbf16>, vector<128x128xf32> -> vector<128x128xf32>
    %c0_18 = arith.constant 0 : index
    %28 = memref.load %arg2[%c0_18] : memref<1xf32, #tpu.memory_space<smem>>
    %cst_19 = arith.constant 1.000000e+00 : f32
    %29 = arith.addf %cst_19, %28 : f32
    %30 = arith.extf %26 : vector<128x128xbf16> to vector<128x128xf32>
    %31 = vector.broadcast %29 : f32 to vector<128x128xf32>
    %32 = arith.mulf %31, %30 : vector<128x128xf32>
    %33 = arith.addf %27, %32 : vector<128x128xf32>
    %34 = arith.truncf %33 : vector<128x128xf32> to vector<128x128xbf16>
    %c0_20 = arith.constant 0 : index
    %c0_21 = arith.constant 0 : index
    %35 = vector.load %arg9[%c0_20, %c0_21] : memref<128x128xbf16, #tpu.memory_space<vmem>>, vector<128x128xbf16>
    %cst_22 = arith.constant dense<0.000000e+00> : vector<128x128xf32>
    %36 = tpu.matmul %34, %35, %cst_22 {dimension_numbers = #tpu.dot_dimension_numbers<[1], [0], [0], [1], [0, 0, 1, 1], [], []>} : vector<128x128xbf16>, vector<128x128xbf16>, vector<128x128xf32> -> vector<128x128xf32>
    %c0_23 = arith.constant 0 : index
    %c0_24 = arith.constant 0 : index
    %37 = vector.load %arg10[%c0_23, %c0_24] : memref<1x128xf32, #tpu.memory_space<vmem>>, vector<1x128xf32>
    %38 = vector.broadcast %37 : vector<1x128xf32> to vector<128x128xf32>
    %39 = arith.addf %36, %38 : vector<128x128xf32>
    %cst_25 = arith.constant 0.000000e+00 : f32
    %40 = vector.broadcast %cst_25 : f32 to vector<128x128xf32>
    %41 = arith.maximumf %39, %40 : vector<128x128xf32>
    %42 = arith.truncf %41 : vector<128x128xf32> to vector<128x128xbf16>
    %c0_26 = arith.constant 0 : index
    %c0_27 = arith.constant 0 : index
    %43 = vector.load %arg11[%c0_26, %c0_27] : memref<128x128xbf16, #tpu.memory_space<vmem>>, vector<128x128xbf16>
    %cst_28 = arith.constant dense<0.000000e+00> : vector<128x128xf32>
    %44 = tpu.matmul %42, %43, %cst_28 {dimension_numbers = #tpu.dot_dimension_numbers<[1], [0], [0], [1], [0, 0, 1, 1], [], []>} : vector<128x128xbf16>, vector<128x128xbf16>, vector<128x128xf32> -> vector<128x128xf32>
    %c0_29 = arith.constant 0 : index
    %c0_30 = arith.constant 0 : index
    %45 = vector.load %arg12[%c0_29, %c0_30] : memref<1x128xf32, #tpu.memory_space<vmem>>, vector<1x128xf32>
    %46 = vector.broadcast %45 : vector<1x128xf32> to vector<128x128xf32>
    %47 = arith.addf %44, %46 : vector<128x128xf32>
    %c0_31 = arith.constant 0 : index
    %c0_32 = arith.constant 0 : index
    %48 = vector.load %arg13[%c0_31, %c0_32] : memref<128x128xf32, #tpu.memory_space<vmem>>, vector<128x128xf32>
    tpu.vector_store %arg13[%c0_31, %c0_32], %47 {strides = array<i32>} : memref<128x128xf32, #tpu.memory_space<vmem>>, vector<128x128xf32>,
    return
  }
  func.func @transform_0(%arg0: i32) -> i32 {
    %c0_i32 = arith.constant 0 : i32
    %c0_i32_0 = arith.constant 0 : i32
    return %c0_i32 : i32
  }
  func.func @transform_1(%arg0: i32) -> i32 {
    %c0_i32 = arith.constant 0 : i32
    %c0_i32_0 = arith.constant 0 : i32
    return %c0_i32 : i32
  }
  func.func @transform_2(%arg0: i32) -> (i32, i32) {
    %c0_i32 = arith.constant 0 : i32
    %c0_i32_0 = arith.constant 0 : i32
    %c0_i32_1 = arith.constant 0 : i32
    return %c0_i32, %c0_i32_0 : i32, i32
  }
  func.func @transform_3(%arg0: i32) -> (i32, i32) {
    %c0_i32 = arith.constant 0 : i32
    %c0_i32_0 = arith.constant 0 : i32
    %c0_i32_1 = arith.constant 0 : i32
    return %c0_i32, %c0_i32_0 : i32, i32
  }
  func.func @transform_4(%arg0: i32) -> (i32, i32) {
    %c0_i32 = arith.constant 0 : i32
    %c0_i32_0 = arith.constant 0 : i32
    %c0_i32_1 = arith.constant 0 : i32
    return %c0_i32, %c0_i32_0 : i32, i32
  }
  func.func @transform_5(%arg0: i32) -> (i32, i32) {
    %c0_i32 = arith.constant 0 : i32
    %c0_i32_0 = arith.constant 0 : i32
    %c0_i32_1 = arith.constant 0 : i32
    return %c0_i32, %c0_i32_0 : i32, i32
  }
  func.func @transform_6(%arg0: i32) -> (i32, i32) {
    %c0_i32 = arith.constant 0 : i32
    %c0_i32_0 = arith.constant 0 : i32
    %c0_i32_1 = arith.constant 0 : i32
    return %c0_i32, %c0_i32_0 : i32, i32
  }
  func.func @transform_7(%arg0: i32) -> (i32, i32) {
    %c0_i32 = arith.constant 0 : i32
    %c0_i32_0 = arith.constant 0 : i32
    %c0_i32_1 = arith.constant 0 : i32
    return %c0_i32, %c0_i32_0 : i32, i32
  }
  func.func @transform_8(%arg0: i32) -> (i32, i32) {
    %c0_i32 = arith.constant 0 : i32
    %c0_i32_0 = arith.constant 0 : i32
    %c0_i32_1 = arith.constant 0 : i32
    return %c0_i32, %c0_i32_0 : i32, i32
  }
  func.func @transform_9(%arg0: i32) -> (i32, i32) {
    %c0_i32 = arith.constant 0 : i32
    %c0_i32_0 = arith.constant 0 : i32
    %c0_i32_1 = arith.constant 0 : i32
    return %c0_i32, %c0_i32_0 : i32, i32
  }
  func.func @transform_10(%arg0: i32) -> (i32, i32) {
    %c0_i32 = arith.constant 0 : i32
    %c0_i32_0 = arith.constant 0 : i32
    %c0_i32_1 = arith.constant 0 : i32
    return %c0_i32, %c0_i32_0 : i32, i32
  }
  func.func @transform_11(%arg0: i32) -> (i32, i32) {
    %c0_i32 = arith.constant 0 : i32
    %c0_i32_0 = arith.constant 0 : i32
    %c0_i32_1 = arith.constant 0 : i32
    return %c0_i32, %c0_i32_0 : i32, i32
  }
  func.func @transform_12(%arg0: i32) -> (i32, i32) {
    %c0_i32 = arith.constant 0 : i32
    %c0_i32_0 = arith.constant 0 : i32
    %c0_i32_1 = arith.constant 0 : i32
    return %c0_i32, %c0_i32_0 : i32, i32
  }
}

</mosaic_0001>

<llo_original>
// kernel: tpu_custom_call.1
$region0: #{tpu_custom_call.1}
  #allocation0 [shape = 'u32[]', space=smem, size = 0x4, offset = 0x4, fixed_abs, tag = 'smem constant byte address 0x4 - core index']
  #allocation1 [shape = 'u32[72,128]{1,0:T(1,128)}', space=vmem, size = 0x9000, scoped, tag = 'internal scratch']
  #allocation2 [shape = 'f32[1]{0:T(128)S(6)}', space=smem, size = 0x200, scoped, tag = 'scoped memory for tpu_custom_call.1']
  #allocation3 [shape = 'f32[1]{0:T(128)S(6)}', space=smem, size = 0x200, scoped, tag = 'scoped memory for tpu_custom_call.1']
  %s0 = inlined_call_operand.<no memory space> [shape: f32[1], index: 0, kind: input, shape index: {}]
  %s1 = inlined_call_operand.<no memory space> [shape: f32[1], index: 1, kind: input, shape index: {}]
  %s2 = inlined_call_operand.hbm [shape: s8[128,128], index: 2, kind: input, shape index: {}]
  %s3 = inlined_call_operand.hbm [shape: bf16[128,128], index: 3, kind: input, shape index: {}]
  %s4 = inlined_call_operand.hbm [shape: bf16[128,128], index: 4, kind: input, shape index: {}]
  %s5 = inlined_call_operand.vmem [shape: f32[1,128], index: 5, kind: input, shape index: {}]
  %s6 = inlined_call_operand.hbm [shape: bf16[128,128], index: 6, kind: input, shape index: {}]
  %s7 = inlined_call_operand.vmem [shape: f32[1,128], index: 7, kind: input, shape index: {}]
  %s8 = inlined_call_operand.hbm [shape: bf16[128,128], index: 8, kind: input, shape index: {}]
  %s9 = inlined_call_operand.vmem [shape: f32[1,128], index: 9, kind: input, shape index: {}]
  %s10 = inlined_call_operand.hbm [shape: bf16[128,128], index: 10, kind: input, shape index: {}]
  %s11 = inlined_call_operand.vmem [shape: f32[1,128], index: 11, kind: input, shape index: {}]
  %s12 = inlined_call_operand.hbm [shape: f32[128,128], index: 12, kind: output, shape index: {}]
  %s13 = sld [smem:[#allocation0]]
  $region82: #{tpu_custom_call.1} parent=0
    _
  %s15 = ssub.s32 1, %s13
  %s16 = scalar_select 0, %s15, %s13
  %17 = sst [smem:[#allocation2]] %s0
  %18 = sst [smem:[#allocation3]] %s1
  $region1: #{tpu_custom_call.1} parent=0
    #allocation4 [shape = 'u8[16384]{0}', space=vmem, size = 0x4000, scoped, tag = 'input window, operand 2, single buffered']
    #allocation5 [shape = 's32[1]{0}', space=sflag, size = 0x4, scoped, tag = 'scoped memory for tpu_custom_call.1']
    #allocation6 [shape = 's32[1]{0}', space=sflag, size = 0x4, scoped, tag = 'scoped memory for tpu_custom_call.1']
    #allocation7 [shape = 'u8[32768]{0}', space=vmem, size = 0x8000, scoped, tag = 'input window, operand 3, single buffered']
    #allocation8 [shape = 's32[1]{0}', space=sflag, size = 0x4, scoped, tag = 'scoped memory for tpu_custom_call.1']
    #allocation9 [shape = 'u8[32768]{0}', space=vmem, size = 0x8000, scoped, tag = 'input window, operand 4, single buffered']
    #allocation10 [shape = 'u8[32768]{0}', space=vmem, size = 0x8000, scoped, tag = 'input window, operand 6, single buffered']
    #allocation11 [shape = 's32[1]{0}', space=sflag, size = 0x4, scoped, tag = 'scoped memory for tpu_custom_call.1']
    #allocation12 [shape = 'u8[32768]{0}', space=vmem, size = 0x8000, scoped, tag = 'input window, operand 8, single buffered']
    #allocation13 [shape = 'u8[32768]{0}', space=vmem, size = 0x8000, scoped, tag = 'input window, operand 10, single buffered']
    #allocation14 [shape = 's32[1]{0}', space=sflag, size = 0x4, scoped, tag = 'scoped memory for tpu_custom_call.1']
    #allocation15 [shape = 'u8[65536]{0}', space=vmem, size = 0x10000, scoped, tag = 'output window, operand 0, single buffered']
    %19 = vsyncpa [#allocation5], 0
    %20 = vsyncpa [#allocation8], 0
    %21 = vsyncpa [#allocation11], 0
    %22 = vsyncpa [#allocation14], 0
    %23 = vsyncpa [#allocation6], 0
    // Predicated region
    $region2: #{tpu_custom_call.1} parent=1 // pred_check
      _
    $region3: #{tpu_custom_call.1} parent=1 // pred_check_branch
      %25 = sbr.rel (0) target = $region5
    $region4: #{tpu_custom_call.1} parent=1 // pred_region
      _
    $region5: #{tpu_custom_call.1} parent=1 // pred_fallthru
      _
    // Predicated region
    $region6: #{tpu_custom_call.1} parent=1 // pred_check
      _
    $region7: #{tpu_custom_call.1} parent=1 // pred_check_branch
      %27 = sbr.rel (0) target = $region9
    $region8: #{tpu_custom_call.1} parent=1 // pred_region
      _
    $region9: #{tpu_custom_call.1} parent=1 // pred_fallthru
      _
    // Predicated region
    $region10: #{tpu_custom_call.1} parent=1 // pred_check
      _
    $region11: #{tpu_custom_call.1} parent=1 // pred_check_branch
      %29 = sbr.rel (0) target = $region13
    $region12: #{tpu_custom_call.1} parent=1 // pred_region
      %31 = vsyncadd [#allocation5], 0
      %s32 = sshll.u32 %s2, 4
      %s33 = int_to_ptr.hbm [resolvable:$true] %s32
      %s34 = sshll.u32 [#allocation4], 4
      %s35 = int_to_ptr.vmem [resolvable:$true] %s34
      %40 = dma.hbm_to_vmem [thread:$0]  %s33, 512, %s35, [#allocation5], 128, 128, 8
    $region13: #{tpu_custom_call.1} parent=1 // pred_fallthru
      _
    // Predicated region
    $region14: #{tpu_custom_call.1} parent=1 // pred_check
      _
    $region15: #{tpu_custom_call.1} parent=1 // pred_check_branch
      %42 = sbr.rel (0) target = $region17
    $region16: #{tpu_custom_call.1} parent=1 // pred_region
      %44 = vsyncadd [#allocation8], 0
      %s45 = sshll.u32 %s3, 4
      %s46 = int_to_ptr.hbm [resolvable:$true] %s45
      %s47 = sshll.u32 [#allocation7], 4
      %s48 = int_to_ptr.vmem [resolvable:$true] %s47
      %53 = dma.hbm_to_vmem [thread:$0]  %s46, 1024, %s48, [#allocation8], 64, 64, 4
    $region17: #{tpu_custom_call.1} parent=1 // pred_fallthru
      _
    // Predicated region
    $region18: #{tpu_custom_call.1} parent=1 // pred_check
      _
    $region19: #{tpu_custom_call.1} parent=1 // pred_check_branch
      %55 = sbr.rel (0) target = $region21
    $region20: #{tpu_custom_call.1} parent=1 // pred_region
      %57 = vsyncadd [#allocation8], 0
      %s58 = sshll.u32 %s4, 4
      %s59 = int_to_ptr.hbm [resolvable:$true] %s58
      %s60 = sshll.u32 [#allocation9], 4
      %s61 = int_to_ptr.vmem [resolvable:$true] %s60
      %66 = dma.hbm_to_vmem [thread:$0]  %s59, 1024, %s61, [#allocation8], 64, 64, 4
    $region21: #{tpu_custom_call.1} parent=1 // pred_fallthru
      _
    // Predicated region
    $region22: #{tpu_custom_call.1} parent=1 // pred_check
      _
    $region23: #{tpu_custom_call.1} parent=1 // pred_check_branch
      %68 = sbr.rel (0) target = $region25
    $region24: #{tpu_custom_call.1} parent=1 // pred_region
      _
    $region25: #{tpu_custom_call.1} parent=1 // pred_fallthru
      _
    // Predicated region
    $region26: #{tpu_custom_call.1} parent=1 // pred_check
      _
    $region27: #{tpu_custom_call.1} parent=1 // pred_check_branch
      %70 = sbr.rel (0) target = $region29
    $region28: #{tpu_custom_call.1} parent=1 // pred_region
      %72 = vsyncadd [#allocation11], 0
      %s73 = sshll.u32 %s6, 4
      %s74 = int_to_ptr.hbm [resolvable:$true] %s73
      %s75 = sshll.u32 [#allocation10], 4
      %s76 = int_to_ptr.vmem [resolvable:$true] %s75
      %81 = dma.hbm_to_vmem [thread:$0]  %s74, 1024, %s76, [#allocation11], 64, 64, 4
    $region29: #{tpu_custom_call.1} parent=1 // pred_fallthru
      _
    // Predicated region
    $region30: #{tpu_custom_call.1} parent=1 // pred_check
      _
    $region31: #{tpu_custom_call.1} parent=1 // pred_check_branch
      %83 = sbr.rel (0) target = $region33
    $region32: #{tpu_custom_call.1} parent=1 // pred_region
      _
    $region33: #{tpu_custom_call.1} parent=1 // pred_fallthru
      _
    // Predicated region
    $region34: #{tpu_custom_call.1} parent=1 // pred_check
      _
    $region35: #{tpu_custom_call.1} parent=1 // pred_check_branch
      %85 = sbr.rel (0) target = $region37
    $region36: #{tpu_custom_call.1} parent=1 // pred_region
      %87 = vsyncadd [#allocation11], 0
      %s88 = sshll.u32 %s8, 4
      %s89 = int_to_ptr.hbm [resolvable:$true] %s88
      %s90 = sshll.u32 [#allocation12], 4
      %s91 = int_to_ptr.vmem [resolvable:$true] %s90
      %96 = dma.hbm_to_vmem [thread:$0]  %s89, 1024, %s91, [#allocation11], 64, 64, 4
    $region37: #{tpu_custom_call.1} parent=1 // pred_fallthru
      _
    // Predicated region
    $region38: #{tpu_custom_call.1} parent=1 // pred_check
      _
    $region39: #{tpu_custom_call.1} parent=1 // pred_check_branch
      %98 = sbr.rel (0) target = $region41
    $region40: #{tpu_custom_call.1} parent=1 // pred_region
      _
    $region41: #{tpu_custom_call.1} parent=1 // pred_fallthru
      _
    // Predicated region
    $region42: #{tpu_custom_call.1} parent=1 // pred_check
      _
    $region43: #{tpu_custom_call.1} parent=1 // pred_check_branch
      %100 = sbr.rel (0) target = $region45
    $region44: #{tpu_custom_call.1} parent=1 // pred_region
      %102 = vsyncadd [#allocation14], 0
      %s103 = sshll.u32 %s10, 4
      %s104 = int_to_ptr.hbm [resolvable:$true] %s103
      %s105 = sshll.u32 [#allocation13], 4
      %s106 = int_to_ptr.vmem [resolvable:$true] %s105
      %111 = dma.hbm_to_vmem [thread:$0]  %s104, 1024, %s106, [#allocation14], 64, 64, 4
    $region45: #{tpu_custom_call.1} parent=1 // pred_fallthru
      _
    // Predicated region
    $region46: #{tpu_custom_call.1} parent=1 // pred_check
      _
    $region47: #{tpu_custom_call.1} parent=1 // pred_check_branch
      %113 = sbr.rel (0) target = $region49
    $region48: #{tpu_custom_call.1} parent=1 // pred_region
      _
    $region49: #{tpu_custom_call.1} parent=1 // pred_fallthru
      _
    // Predicated region
    $region50: #{tpu_custom_call.1} parent=1 // pred_check
      _
    $region51: #{tpu_custom_call.1} parent=1 // pred_check_branch
      %115 = sbr.rel (0) target = $region53
    $region52: #{tpu_custom_call.1} parent=1 // pred_region
      %117 = dma.done [#allocation5], 512
    $region53: #{tpu_custom_call.1} parent=1 // pred_fallthru
      _
    // Predicated region
    $region54: #{tpu_custom_call.1} parent=1 // pred_check
      _
    $region55: #{tpu_custom_call.1} parent=1 // pred_check_branch
      %119 = sbr.rel (0) target = $region57
    $region56: #{tpu_custom_call.1} parent=1 // pred_region
      %121 = dma.done [#allocation8], 1024
    $region57: #{tpu_custom_call.1} parent=1 // pred_fallthru
      _
    // Predicated region
    $region58: #{tpu_custom_call.1} parent=1 // pred_check
      _
    $region59: #{tpu_custom_call.1} parent=1 // pred_check_branch
      %123 = sbr.rel (0) target = $region61
    $region60: #{tpu_custom_call.1} parent=1 // pred_region
      %125 = dma.done [#allocation8], 1024
    $region61: #{tpu_custom_call.1} parent=1 // pred_fallthru
      _
    // Predicated region
    $region62: #{tpu_custom_call.1} parent=1 // pred_check
      _
    $region63: #{tpu_custom_call.1} parent=1 // pred_check_branch
      %127 = sbr.rel (0) target = $region65
    $region64: #{tpu_custom_call.1} parent=1 // pred_region
      %129 = dma.done [#allocation11], 1024
    $region65: #{tpu_custom_call.1} parent=1 // pred_fallthru
      _
    // Predicated region
    $region66: #{tpu_custom_call.1} parent=1 // pred_check
      _
    $region67: #{tpu_custom_call.1} parent=1 // pred_check_branch
      %131 = sbr.rel (0) target = $region69
    $region68: #{tpu_custom_call.1} parent=1 // pred_region
      %133 = dma.done [#allocation11], 1024
    $region69: #{tpu_custom_call.1} parent=1 // pred_fallthru
      _
    // Predicated region
    $region70: #{tpu_custom_call.1} parent=1 // pred_check
      _
    $region71: #{tpu_custom_call.1} parent=1 // pred_check_branch
      %135 = sbr.rel (0) target = $region73
    $region72: #{tpu_custom_call.1} parent=1 // pred_region
      %137 = dma.done [#allocation14], 1024
    $region73: #{tpu_custom_call.1} parent=1 // pred_fallthru
      _
    %v138 = vld [vmem:[#allocation4] sm:$0xff]
    %v139 = vld [vmem:[#allocation4 + $0x8] sm:$0xff]
    %v140 = vld [vmem:[#allocation4 + $0x10] sm:$0xff]
    %v141 = vld [vmem:[#allocation4 + $0x18] sm:$0xff]
    %v142 = vunpack.c.0.s8 %v138
    %v143 = vunpack.c.1.s8 %v138
    %v144 = vunpack.c.2.s8 %v138
    %v145 = vunpack.c.3.s8 %v138
    %v146 = vunpack.c.0.s8 %v139
    %v147 = vunpack.c.1.s8 %v139
    %v148 = vunpack.c.2.s8 %v139
    %v149 = vunpack.c.3.s8 %v139
    %v150 = vunpack.c.0.s8 %v140
    %v151 = vunpack.c.1.s8 %v140
    %v152 = vunpack.c.2.s8 %v140
    %v153 = vunpack.c.3.s8 %v140
    %v154 = vunpack.c.0.s8 %v141
    %v155 = vunpack.c.1.s8 %v141
    %v156 = vunpack.c.2.s8 %v141
    %v157 = vunpack.c.3.s8 %v141
    %v158 = vcvt.s32.f32 %v142
    %v159 = vcvt.s32.f32 %v143
    %v160 = vcvt.s32.f32 %v144
    %v161 = vcvt.s32.f32 %v145
    %v162 = vcvt.s32.f32 %v146
    %v163 = vcvt.s32.f32 %v147
    %v164 = vcvt.s32.f32 %v148
    %v165 = vcvt.s32.f32 %v149
    %v166 = vcvt.s32.f32 %v150
    %v167 = vcvt.s32.f32 %v151
    %v168 = vcvt.s32.f32 %v152
    %v169 = vcvt.s32.f32 %v153
    %v170 = vcvt.s32.f32 %v154
    %v171 = vcvt.s32.f32 %v155
    %v172 = vcvt.s32.f32 %v156
    %v173 = vcvt.s32.f32 %v157
    %v174 = vpack.c.bf16 %v159, %v158
    %v175 = vpack.c.bf16 %v161, %v160
    %v176 = vpack.c.bf16 %v163, %v162
    %v177 = vpack.c.bf16 %v165, %v164
    %v178 = vpack.c.bf16 %v167, %v166
    %v179 = vpack.c.bf16 %v169, %v168
    %v180 = vpack.c.bf16 %v171, %v170
    %v181 = vpack.c.bf16 %v173, %v172
    %v182 = vld [vmem:[#allocation7] sm:$0xf]
    %v183 = vld [vmem:[#allocation7 + $0x4] sm:$0xf]
    %v184 = vld [vmem:[#allocation7 + $0x8] sm:$0xf]
    %v185 = vld [vmem:[#allocation7 + $0xc] sm:$0xf]
    %v186 = vld [vmem:[#allocation7 + $0x10] sm:$0xf]
    %v187 = vld [vmem:[#allocation7 + $0x14] sm:$0xf]
    %v188 = vld [vmem:[#allocation7 + $0x18] sm:$0xf]
    %v189 = vld [vmem:[#allocation7 + $0x1c] sm:$0xf]
    %v190 = vld [vmem:[#allocation7 + $0x20] sm:$0xf]
    %v191 = vld [vmem:[#allocation7 + $0x24] sm:$0xf]
    %v192 = vld [vmem:[#allocation7 + $0x28] sm:$0xf]
    %v193 = vld [vmem:[#allocation7 + $0x2c] sm:$0xf]
    %v194 = vld [vmem:[#allocation7 + $0x30] sm:$0xf]
    %v195 = vld [vmem:[#allocation7 + $0x34] sm:$0xf]
    %v196 = vld [vmem:[#allocation7 + $0x38] sm:$0xf]
    %v197 = vld [vmem:[#allocation7 + $0x3c] sm:$0xf]
    %s198 = sld [smem:[#allocation2]]
    %s199 = sadd.f32 %s198, 1.0
    %v200 = vunpack.c.l.bf16 %v182
    %v201 = vunpack.c.l.bf16 %v183
    %v202 = vunpack.c.l.bf16 %v184
    %v203 = vunpack.c.l.bf16 %v185
    %v204 = vunpack.c.l.bf16 %v186
    %v205 = vunpack.c.l.bf16 %v187
    %v206 = vunpack.c.l.bf16 %v188
    %v207 = vunpack.c.l.bf16 %v189
    %v208 = vunpack.c.l.bf16 %v190
    %v209 = vunpack.c.l.bf16 %v191
    %v210 = vunpack.c.l.bf16 %v192
    %v211 = vunpack.c.l.bf16 %v193
    %v212 = vunpack.c.l.bf16 %v194
    %v213 = vunpack.c.l.bf16 %v195
    %v214 = vunpack.c.l.bf16 %v196
    %v215 = vunpack.c.l.bf16 %v197
    %v216 = vstv %s199
    %v217 = vmul.f32 %v216, %v200
    %v218 = vmul.f32 %v216, %v201
    %v219 = vmul.f32 %v216, %v202
    %v220 = vmul.f32 %v216, %v203
    %v221 = vmul.f32 %v216, %v204
    %v222 = vmul.f32 %v216, %v205
    %v223 = vmul.f32 %v216, %v206
    %v224 = vmul.f32 %v216, %v207
    %v225 = vmul.f32 %v216, %v208
    %v226 = vmul.f32 %v216, %v209
    %v227 = vmul.f32 %v216, %v210
    %v228 = vmul.f32 %v216, %v211
    %v229 = vmul.f32 %v216, %v212
    %v230 = vmul.f32 %v216, %v213
    %v231 = vmul.f32 %v216, %v214
    %v232 = vmul.f32 %v216, %v215
    %v249 = vunpack.c.l.b16 %v182
    %v250 = vunpack.c.l.b16 %v183
    %v251 = vunpack.c.l.b16 %v184
    %v252 = vunpack.c.l.b16 %v185
    %v253 = vunpack.c.l.b16 %v186
    %v254 = vunpack.c.l.b16 %v187
    %v255 = vunpack.c.l.b16 %v188
    %v256 = vunpack.c.l.b16 %v189
    %v257 = vunpack.c.l.b16 %v190
    %v258 = vunpack.c.l.b16 %v191
    %v259 = vunpack.c.l.b16 %v192
    %v260 = vunpack.c.l.b16 %v193
    %v261 = vunpack.c.l.b16 %v194
    %v262 = vunpack.c.l.b16 %v195
    %v263 = vunpack.c.l.b16 %v196
    %v264 = vunpack.c.l.b16 %v197
    %v265 = vpack.c.b16 %v250, %v249
    %v266 = vpack.c.b16 %v252, %v251
    %v267 = vpack.c.b16 %v254, %v253
    %v268 = vpack.c.b16 %v256, %v255
    %v269 = vpack.c.b16 %v258, %v257
    %v270 = vpack.c.b16 %v260, %v259
    %v271 = vpack.c.b16 %v262, %v261
    %v272 = vpack.c.b16 %v264, %v263
    %281 = vmatpush.bf16.msra.mxu0 %v272
    %282 = vmatpush.bf16.msra.mxu0 %v271
    %283 = vmatpush.bf16.msra.mxu0 %v270
    %284 = vmatpush.bf16.msra.mxu0 %v269
    %285 = vmatpush.bf16.msra.mxu0 %v268
    %286 = vmatpush.bf16.msra.mxu0 %v267
    %287 = vmatpush.bf16.msra.mxu0 %v266
    %288 = vmatpush.bf16.msra.mxu0 %v265
    %289 = vmatmul.bf16.gmra.mxu0 %v174
    %v290 = vpop.f32.mrf.mxu0
    %v291 = vadd.f32 %v217, %v290
    %v292 = vpop.f32.mrf.mxu0
    %v293 = vadd.f32 %v218, %v292
    %294 = vmatmul.bf16.gmra.mxu0 %v175
    %v295 = vpop.f32.mrf.mxu0
    %v296 = vadd.f32 %v219, %v295
    %v297 = vpop.f32.mrf.mxu0
    %v298 = vadd.f32 %v220, %v297
    %299 = vmatmul.bf16.gmra.mxu0 %v176
    %v300 = vpop.f32.mrf.mxu0
    %v301 = vadd.f32 %v221, %v300
    %v302 = vpop.f32.mrf.mxu0
    %v303 = vadd.f32 %v222, %v302
    %304 = vmatmul.bf16.gmra.mxu0 %v177
    %v305 = vpop.f32.mrf.mxu0
    %v306 = vadd.f32 %v223, %v305
    %v307 = vpop.f32.mrf.mxu0
    %v308 = vadd.f32 %v224, %v307
    %309 = vmatmul.bf16.gmra.mxu0 %v178
    %v310 = vpop.f32.mrf.mxu0
    %v311 = vadd.f32 %v225, %v310
    %v312 = vpop.f32.mrf.mxu0
    %v313 = vadd.f32 %v226, %v312
    %314 = vmatmul.bf16.gmra.mxu0 %v179
    %v315 = vpop.f32.mrf.mxu0
    %v316 = vadd.f32 %v227, %v315
    %v317 = vpop.f32.mrf.mxu0
    %v318 = vadd.f32 %v228, %v317
    %319 = vmatmul.bf16.gmra.mxu0 %v180
    %v320 = vpop.f32.mrf.mxu0
    %v321 = vadd.f32 %v229, %v320
    %v322 = vpop.f32.mrf.mxu0
    %v323 = vadd.f32 %v230, %v322
    %324 = vmatmul.bf16.gmra.mxu0 %v181
    %v325 = vpop.f32.mrf.mxu0
    %v326 = vadd.f32 %v231, %v325
    %v327 = vpop.f32.mrf.mxu0
    %v328 = vadd.f32 %v232, %v327
    %329 = vdwg.mxu0
    %v330 = vpack.c.bf16 %v293, %v291
    %v331 = vpack.c.bf16 %v298, %v296
    %v332 = vpack.c.bf16 %v303, %v301
    %v333 = vpack.c.bf16 %v308, %v306
    %v334 = vpack.c.bf16 %v313, %v311
    %v335 = vpack.c.bf16 %v318, %v316
    %v336 = vpack.c.bf16 %v323, %v321
    %v337 = vpack.c.bf16 %v328, %v326
    %v338 = vld [vmem:[#allocation9] sm:$0xf]
    %v339 = vld [vmem:[#allocation9 + $0x4] sm:$0xf]
    %v340 = vld [vmem:[#allocation9 + $0x8] sm:$0xf]
    %v341 = vld [vmem:[#allocation9 + $0xc] sm:$0xf]
    %v342 = vld [vmem:[#allocation9 + $0x10] sm:$0xf]
    %v343 = vld [vmem:[#allocation9 + $0x14] sm:$0xf]
    %v344 = vld [vmem:[#allocation9 + $0x18] sm:$0xf]
    %v345 = vld [vmem:[#allocation9 + $0x1c] sm:$0xf]
    %v346 = vld [vmem:[#allocation9 + $0x20] sm:$0xf]
    %v347 = vld [vmem:[#allocation9 + $0x24] sm:$0xf]
    %v348 = vld [vmem:[#allocation9 + $0x28] sm:$0xf]
    %v349 = vld [vmem:[#allocation9 + $0x2c] sm:$0xf]
    %v350 = vld [vmem:[#allocation9 + $0x30] sm:$0xf]
    %v351 = vld [vmem:[#allocation9 + $0x34] sm:$0xf]
    %v352 = vld [vmem:[#allocation9 + $0x38] sm:$0xf]
    %v353 = vld [vmem:[#allocation9 + $0x3c] sm:$0xf]
    %v354 = vld [vmem:[%s5] sm:$0x1]
    %v356 = vperm.slane %v354, 0
    %v374 = vunpack.c.l.b16 %v338
    %v375 = vunpack.c.l.b16 %v339
    %v376 = vunpack.c.l.b16 %v340
    %v377 = vunpack.c.l.b16 %v341
    %v378 = vunpack.c.l.b16 %v342
    %v379 = vunpack.c.l.b16 %v343
    %v380 = vunpack.c.l.b16 %v344
    %v381 = vunpack.c.l.b16 %v345
    %v382 = vunpack.c.l.b16 %v346
    %v383 = vunpack.c.l.b16 %v347
    %v384 = vunpack.c.l.b16 %v348
    %v385 = vunpack.c.l.b16 %v349
    %v386 = vunpack.c.l.b16 %v350
    %v387 = vunpack.c.l.b16 %v351
    %v388 = vunpack.c.l.b16 %v352
    %v389 = vunpack.c.l.b16 %v353
    %v390 = vpack.c.b16 %v375, %v374
    %v391 = vpack.c.b16 %v377, %v376
    %v392 = vpack.c.b16 %v379, %v378
    %v393 = vpack.c.b16 %v381, %v380
    %v394 = vpack.c.b16 %v383, %v382
    %v395 = vpack.c.b16 %v385, %v384
    %v396 = vpack.c.b16 %v387, %v386
    %v397 = vpack.c.b16 %v389, %v388
    %406 = vmatpush.bf16.msra.mxu0 %v397
    %407 = vmatpush.bf16.msra.mxu0 %v396
    %408 = vmatpush.bf16.msra.mxu0 %v395
    %409 = vmatpush.bf16.msra.mxu0 %v394
    %410 = vmatpush.bf16.msra.mxu0 %v393
    %411 = vmatpush.bf16.msra.mxu0 %v392
    %412 = vmatpush.bf16.msra.mxu0 %v391
    %413 = vmatpush.bf16.msra.mxu0 %v390
    %414 = vmatmul.bf16.gmra.mxu0 %v330
    %v415 = vpop.f32.mrf.mxu0
    %v416 = vadd.f32 %v356, %v415
    %v417 = vpop.f32.mrf.mxu0
    %v418 = vadd.f32 %v356, %v417
    %419 = vmatmul.bf16.gmra.mxu0 %v331
    %v420 = vpop.f32.mrf.mxu0
    %v421 = vadd.f32 %v356, %v420
    %v422 = vpop.f32.mrf.mxu0
    %v423 = vadd.f32 %v356, %v422
    %424 = vmatmul.bf16.gmra.mxu0 %v332
    %v425 = vpop.f32.mrf.mxu0
    %v426 = vadd.f32 %v356, %v425
    %v427 = vpop.f32.mrf.mxu0
    %v428 = vadd.f32 %v356, %v427
    %429 = vmatmul.bf16.gmra.mxu0 %v333
    %v430 = vpop.f32.mrf.mxu0
    %v431 = vadd.f32 %v356, %v430
    %v432 = vpop.f32.mrf.mxu0
    %v433 = vadd.f32 %v356, %v432
    %434 = vmatmul.bf16.gmra.mxu0 %v334
    %v435 = vpop.f32.mrf.mxu0
    %v436 = vadd.f32 %v356, %v435
    %v437 = vpop.f32.mrf.mxu0
    %v438 = vadd.f32 %v356, %v437
    %439 = vmatmul.bf16.gmra.mxu0 %v335
    %v440 = vpop.f32.mrf.mxu0
    %v441 = vadd.f32 %v356, %v440
    %v442 = vpop.f32.mrf.mxu0
    %v443 = vadd.f32 %v356, %v442
    %444 = vmatmul.bf16.gmra.mxu0 %v336
    %v445 = vpop.f32.mrf.mxu0
    %v446 = vadd.f32 %v356, %v445
    %v447 = vpop.f32.mrf.mxu0
    %v448 = vadd.f32 %v356, %v447
    %449 = vmatmul.bf16.gmra.mxu0 %v337
    %v450 = vpop.f32.mrf.mxu0
    %v451 = vadd.f32 %v356, %v450
    %v452 = vpop.f32.mrf.mxu0
    %v453 = vadd.f32 %v356, %v452
    %454 = vdwg.mxu0
    %v455 = vmax.f32 %v416, 0.0
    %v456 = vmax.f32 %v418, 0.0
    %v457 = vmax.f32 %v421, 0.0
    %v458 = vmax.f32 %v423, 0.0
    %v459 = vmax.f32 %v426, 0.0
    %v460 = vmax.f32 %v428, 0.0
    %v461 = vmax.f32 %v431, 0.0
    %v462 = vmax.f32 %v433, 0.0
    %v463 = vmax.f32 %v436, 0.0
    %v464 = vmax.f32 %v438, 0.0
    %v465 = vmax.f32 %v441, 0.0
    %v466 = vmax.f32 %v443, 0.0
    %v467 = vmax.f32 %v446, 0.0
    %v468 = vmax.f32 %v448, 0.0
    %v469 = vmax.f32 %v451, 0.0
    %v470 = vmax.f32 %v453, 0.0
    %v471 = vpack.c.bf16 %v456, %v455
    %v472 = vpack.c.bf16 %v458, %v457
    %v473 = vpack.c.bf16 %v460, %v459
    %v474 = vpack.c.bf16 %v462, %v461
    %v475 = vpack.c.bf16 %v464, %v463
    %v476 = vpack.c.bf16 %v466, %v465
    %v477 = vpack.c.bf16 %v468, %v467
    %v478 = vpack.c.bf16 %v470, %v469
    %v479 = vld [vmem:[#allocation10] sm:$0xf]
    %v480 = vld [vmem:[#allocation10 + $0x4] sm:$0xf]
    %v481 = vld [vmem:[#allocation10 + $0x8] sm:$0xf]
    %v482 = vld [vmem:[#allocation10 + $0xc] sm:$0xf]
    %v483 = vld [vmem:[#allocation10 + $0x10] sm:$0xf]
    %v484 = vld [vmem:[#allocation10 + $0x14] sm:$0xf]
    %v485 = vld [vmem:[#allocation10 + $0x18] sm:$0xf]
    %v486 = vld [vmem:[#allocation10 + $0x1c] sm:$0xf]
    %v487 = vld [vmem:[#allocation10 + $0x20] sm:$0xf]
    %v488 = vld [vmem:[#allocation10 + $0x24] sm:$0xf]
    %v489 = vld [vmem:[#allocation10 + $0x28] sm:$0xf]
    %v490 = vld [vmem:[#allocation10 + $0x2c] sm:$0xf]
    %v491 = vld [vmem:[#allocation10 + $0x30] sm:$0xf]
    %v492 = vld [vmem:[#allocation10 + $0x34] sm:$0xf]
    %v493 = vld [vmem:[#allocation10 + $0x38] sm:$0xf]
    %v494 = vld [vmem:[#allocation10 + $0x3c] sm:$0xf]
    %v495 = vld [vmem:[%s7] sm:$0x1]
    %v497 = vperm.slane %v495, 0
    %v515 = vunpack.c.l.b16 %v479
    %v516 = vunpack.c.l.b16 %v480
    %v517 = vunpack.c.l.b16 %v481
    %v518 = vunpack.c.l.b16 %v482
    %v519 = vunpack.c.l.b16 %v483
    %v520 = vunpack.c.l.b16 %v484
    %v521 = vunpack.c.l.b16 %v485
    %v522 = vunpack.c.l.b16 %v486
    %v523 = vunpack.c.l.b16 %v487
    %v524 = vunpack.c.l.b16 %v488
    %v525 = vunpack.c.l.b16 %v489
    %v526 = vunpack.c.l.b16 %v490
    %v527 = vunpack.c.l.b16 %v491
    %v528 = vunpack.c.l.b16 %v492
    %v529 = vunpack.c.l.b16 %v493
    %v530 = vunpack.c.l.b16 %v494
    %v531 = vpack.c.b16 %v516, %v515
    %v532 = vpack.c.b16 %v518, %v517
    %v533 = vpack.c.b16 %v520, %v519
    %v534 = vpack.c.b16 %v522, %v521
    %v535 = vpack.c.b16 %v524, %v523
    %v536 = vpack.c.b16 %v526, %v525
    %v537 = vpack.c.b16 %v528, %v527
    %v538 = vpack.c.b16 %v530, %v529
    %547 = vmatpush.bf16.msra.mxu0 %v538
    %548 = vmatpush.bf16.msra.mxu0 %v537
    %549 = vmatpush.bf16.msra.mxu0 %v536
    %550 = vmatpush.bf16.msra.mxu0 %v535
    %551 = vmatpush.bf16.msra.mxu0 %v534
    %552 = vmatpush.bf16.msra.mxu0 %v533
    %553 = vmatpush.bf16.msra.mxu0 %v532
    %554 = vmatpush.bf16.msra.mxu0 %v531
    %555 = vmatmul.bf16.gmra.mxu0 %v471
    %v556 = vpop.f32.mrf.mxu0
    %v557 = vadd.f32 %v497, %v556
    %v558 = vpop.f32.mrf.mxu0
    %v559 = vadd.f32 %v497, %v558
    %560 = vmatmul.bf16.gmra.mxu0 %v472
    %v561 = vpop.f32.mrf.mxu0
    %v562 = vadd.f32 %v497, %v561
    %v563 = vpop.f32.mrf.mxu0
    %v564 = vadd.f32 %v497, %v563
    %565 = vmatmul.bf16.gmra.mxu0 %v473
    %v566 = vpop.f32.mrf.mxu0
    %v567 = vadd.f32 %v497, %v566
    %v568 = vpop.f32.mrf.mxu0
    %v569 = vadd.f32 %v497, %v568
    %570 = vmatmul.bf16.gmra.mxu0 %v474
    %v571 = vpop.f32.mrf.mxu0
    %v572 = vadd.f32 %v497, %v571
    %v573 = vpop.f32.mrf.mxu0
    %v574 = vadd.f32 %v497, %v573
    %575 = vmatmul.bf16.gmra.mxu0 %v475
    %v576 = vpop.f32.mrf.mxu0
    %v577 = vadd.f32 %v497, %v576
    %v578 = vpop.f32.mrf.mxu0
    %v579 = vadd.f32 %v497, %v578
    %580 = vmatmul.bf16.gmra.mxu0 %v476
    %v581 = vpop.f32.mrf.mxu0
    %v582 = vadd.f32 %v497, %v581
    %v583 = vpop.f32.mrf.mxu0
    %v584 = vadd.f32 %v497, %v583
    %585 = vmatmul.bf16.gmra.mxu0 %v477
    %v586 = vpop.f32.mrf.mxu0
    %v587 = vadd.f32 %v497, %v586
    %v588 = vpop.f32.mrf.mxu0
    %v589 = vadd.f32 %v497, %v588
    %590 = vmatmul.bf16.gmra.mxu0 %v478
    %v591 = vpop.f32.mrf.mxu0
    %v592 = vadd.f32 %v497, %v591
    %v593 = vpop.f32.mrf.mxu0
    %v594 = vadd.f32 %v497, %v593
    %595 = vdwg.mxu0
    %v596 = vmax.f32 %v557, 0.0
    %v597 = vmax.f32 %v559, 0.0
    %v598 = vmax.f32 %v562, 0.0
    %v599 = vmax.f32 %v564, 0.0
    %v600 = vmax.f32 %v567, 0.0
    %v601 = vmax.f32 %v569, 0.0
    %v602 = vmax.f32 %v572, 0.0
    %v603 = vmax.f32 %v574, 0.0
    %v604 = vmax.f32 %v577, 0.0
    %v605 = vmax.f32 %v579, 0.0
    %v606 = vmax.f32 %v582, 0.0
    %v607 = vmax.f32 %v584, 0.0
    %v608 = vmax.f32 %v587, 0.0
    %v609 = vmax.f32 %v589, 0.0
    %v610 = vmax.f32 %v592, 0.0
    %v611 = vmax.f32 %v594, 0.0
    %v612 = vpack.c.bf16 %v596, %v596
    %v613 = vpack.c.bf16 %v597, %v597
    %v614 = vpack.c.bf16 %v598, %v598
    %v615 = vpack.c.bf16 %v599, %v599
    %v616 = vpack.c.bf16 %v600, %v600
    %v617 = vpack.c.bf16 %v601, %v601
    %v618 = vpack.c.bf16 %v602, %v602
    %v619 = vpack.c.bf16 %v603, %v603
    %v620 = vpack.c.bf16 %v604, %v604
    %v621 = vpack.c.bf16 %v605, %v605
    %v622 = vpack.c.bf16 %v606, %v606
    %v623 = vpack.c.bf16 %v607, %v607
    %v624 = vpack.c.bf16 %v608, %v608
    %v625 = vpack.c.bf16 %v609, %v609
    %v626 = vpack.c.bf16 %v610, %v610
    %v627 = vpack.c.bf16 %v611, %v611
    %s628 = sld [smem:[#allocation3]]
    %s629 = sadd.f32 %s628, 1.0
    %v630 = vunpack.c.l.bf16 %v612
    %v631 = vunpack.c.l.bf16 %v613
    %v632 = vunpack.c.l.bf16 %v614
    %v633 = vunpack.c.l.bf16 %v615
    %v634 = vunpack.c.l.bf16 %v616
    %v635 = vunpack.c.l.bf16 %v617
    %v636 = vunpack.c.l.bf16 %v618
    %v637 = vunpack.c.l.bf16 %v619
    %v638 = vunpack.c.l.bf16 %v620
    %v639 = vunpack.c.l.bf16 %v621
    %v640 = vunpack.c.l.bf16 %v622
    %v641 = vunpack.c.l.bf16 %v623
    %v642 = vunpack.c.l.bf16 %v624
    %v643 = vunpack.c.l.bf16 %v625
    %v644 = vunpack.c.l.bf16 %v626
    %v645 = vunpack.c.l.bf16 %v627
    %v646 = vstv %s629
    %v647 = vmul.f32 %v646, %v630
    %v648 = vmul.f32 %v646, %v631
    %v649 = vmul.f32 %v646, %v632
    %v650 = vmul.f32 %v646, %v633
    %v651 = vmul.f32 %v646, %v634
    %v652 = vmul.f32 %v646, %v635
    %v653 = vmul.f32 %v646, %v636
    %v654 = vmul.f32 %v646, %v637
    %v655 = vmul.f32 %v646, %v638
    %v656 = vmul.f32 %v646, %v639
    %v657 = vmul.f32 %v646, %v640
    %v658 = vmul.f32 %v646, %v641
    %v659 = vmul.f32 %v646, %v642
    %v660 = vmul.f32 %v646, %v643
    %v661 = vmul.f32 %v646, %v644
    %v662 = vmul.f32 %v646, %v645
    %v679 = vunpack.c.l.b16 %v612
    %v680 = vunpack.c.l.b16 %v613
    %v681 = vunpack.c.l.b16 %v614
    %v682 = vunpack.c.l.b16 %v615
    %v683 = vunpack.c.l.b16 %v616
    %v684 = vunpack.c.l.b16 %v617
    %v685 = vunpack.c.l.b16 %v618
    %v686 = vunpack.c.l.b16 %v619
    %v687 = vunpack.c.l.b16 %v620
    %v688 = vunpack.c.l.b16 %v621
    %v689 = vunpack.c.l.b16 %v622
    %v690 = vunpack.c.l.b16 %v623
    %v691 = vunpack.c.l.b16 %v624
    %v692 = vunpack.c.l.b16 %v625
    %v693 = vunpack.c.l.b16 %v626
    %v694 = vunpack.c.l.b16 %v627
    %v695 = vpack.c.b16 %v680, %v679
    %v696 = vpack.c.b16 %v682, %v681
    %v697 = vpack.c.b16 %v684, %v683
    %v698 = vpack.c.b16 %v686, %v685
    %v699 = vpack.c.b16 %v688, %v687
    %v700 = vpack.c.b16 %v690, %v689
    %v701 = vpack.c.b16 %v692, %v691
    %v702 = vpack.c.b16 %v694, %v693
    %711 = vmatpush.bf16.msra.mxu0 %v702
    %712 = vmatpush.bf16.msra.mxu0 %v701
    %713 = vmatpush.bf16.msra.mxu0 %v700
    %714 = vmatpush.bf16.msra.mxu0 %v699
    %715 = vmatpush.bf16.msra.mxu0 %v698
    %716 = vmatpush.bf16.msra.mxu0 %v697
    %717 = vmatpush.bf16.msra.mxu0 %v696
    %718 = vmatpush.bf16.msra.mxu0 %v695
    %719 = vmatmul.bf16.gmra.mxu0 %v174
    %v720 = vpop.f32.mrf.mxu0
    %v721 = vadd.f32 %v647, %v720
    %v722 = vpop.f32.mrf.mxu0
    %v723 = vadd.f32 %v648, %v722
    %724 = vmatmul.bf16.gmra.mxu0 %v175
    %v725 = vpop.f32.mrf.mxu0
    %v726 = vadd.f32 %v649, %v725
    %v727 = vpop.f32.mrf.mxu0
    %v728 = vadd.f32 %v650, %v727
    %729 = vmatmul.bf16.gmra.mxu0 %v176
    %v730 = vpop.f32.mrf.mxu0
    %v731 = vadd.f32 %v651, %v730
    %v732 = vpop.f32.mrf.mxu0
    %v733 = vadd.f32 %v652, %v732
    %734 = vmatmul.bf16.gmra.mxu0 %v177
    %v735 = vpop.f32.mrf.mxu0
    %v736 = vadd.f32 %v653, %v735
    %v737 = vpop.f32.mrf.mxu0
    %v738 = vadd.f32 %v654, %v737
    %739 = vmatmul.bf16.gmra.mxu0 %v178
    %v740 = vpop.f32.mrf.mxu0
    %v741 = vadd.f32 %v655, %v740
    %v742 = vpop.f32.mrf.mxu0
    %v743 = vadd.f32 %v656, %v742
    %744 = vmatmul.bf16.gmra.mxu0 %v179
    %v745 = vpop.f32.mrf.mxu0
    %v746 = vadd.f32 %v657, %v745
    %v747 = vpop.f32.mrf.mxu0
    %v748 = vadd.f32 %v658, %v747
    %749 = vmatmul.bf16.gmra.mxu0 %v180
    %v750 = vpop.f32.mrf.mxu0
    %v751 = vadd.f32 %v659, %v750
    %v752 = vpop.f32.mrf.mxu0
    %v753 = vadd.f32 %v660, %v752
    %754 = vmatmul.bf16.gmra.mxu0 %v181
    %v755 = vpop.f32.mrf.mxu0
    %v756 = vadd.f32 %v661, %v755
    %v757 = vpop.f32.mrf.mxu0
    %v758 = vadd.f32 %v662, %v757
    %759 = vdwg.mxu0
    %v760 = vpack.c.bf16 %v723, %v721
    %v761 = vpack.c.bf16 %v728, %v726
    %v762 = vpack.c.bf16 %v733, %v731
    %v763 = vpack.c.bf16 %v738, %v736
    %v764 = vpack.c.bf16 %v743, %v741
    %v765 = vpack.c.bf16 %v748, %v746
    %v766 = vpack.c.bf16 %v753, %v751
    %v767 = vpack.c.bf16 %v758, %v756
    %v768 = vld [vmem:[#allocation12] sm:$0xf]
    %v769 = vld [vmem:[#allocation12 + $0x4] sm:$0xf]
    %v770 = vld [vmem:[#allocation12 + $0x8] sm:$0xf]
    %v771 = vld [vmem:[#allocation12 + $0xc] sm:$0xf]
    %v772 = vld [vmem:[#allocation12 + $0x10] sm:$0xf]
    %v773 = vld [vmem:[#allocation12 + $0x14] sm:$0xf]
    %v774 = vld [vmem:[#allocation12 + $0x18] sm:$0xf]
    %v775 = vld [vmem:[#allocation12 + $0x1c] sm:$0xf]
    %v776 = vld [vmem:[#allocation12 + $0x20] sm:$0xf]
    %v777 = vld [vmem:[#allocation12 + $0x24] sm:$0xf]
    %v778 = vld [vmem:[#allocation12 + $0x28] sm:$0xf]
    %v779 = vld [vmem:[#allocation12 + $0x2c] sm:$0xf]
    %v780 = vld [vmem:[#allocation12 + $0x30] sm:$0xf]
    %v781 = vld [vmem:[#allocation12 + $0x34] sm:$0xf]
    %v782 = vld [vmem:[#allocation12 + $0x38] sm:$0xf]
    %v783 = vld [vmem:[#allocation12 + $0x3c] sm:$0xf]
    %v784 = vld [vmem:[%s9] sm:$0x1]
    %v786 = vperm.slane %v784, 0
    %v804 = vunpack.c.l.b16 %v768
    %v805 = vunpack.c.l.b16 %v769
    %v806 = vunpack.c.l.b16 %v770
    %v807 = vunpack.c.l.b16 %v771
    %v808 = vunpack.c.l.b16 %v772
    %v809 = vunpack.c.l.b16 %v773
    %v810 = vunpack.c.l.b16 %v774
    %v811 = vunpack.c.l.b16 %v775
    %v812 = vunpack.c.l.b16 %v776
    %v813 = vunpack.c.l.b16 %v777
    %v814 = vunpack.c.l.b16 %v778
    %v815 = vunpack.c.l.b16 %v779
    %v816 = vunpack.c.l.b16 %v780
    %v817 = vunpack.c.l.b16 %v781
    %v818 = vunpack.c.l.b16 %v782
    %v819 = vunpack.c.l.b16 %v783
    %v820 = vpack.c.b16 %v805, %v804
    %v821 = vpack.c.b16 %v807, %v806
    %v822 = vpack.c.b16 %v809, %v808
    %v823 = vpack.c.b16 %v811, %v810
    %v824 = vpack.c.b16 %v813, %v812
    %v825 = vpack.c.b16 %v815, %v814
    %v826 = vpack.c.b16 %v817, %v816
    %v827 = vpack.c.b16 %v819, %v818
    %836 = vmatpush.bf16.msra.mxu0 %v827
    %837 = vmatpush.bf16.msra.mxu0 %v826
    %838 = vmatpush.bf16.msra.mxu0 %v825
    %839 = vmatpush.bf16.msra.mxu0 %v824
    %840 = vmatpush.bf16.msra.mxu0 %v823
    %841 = vmatpush.bf16.msra.mxu0 %v822
    %842 = vmatpush.bf16.msra.mxu0 %v821
    %843 = vmatpush.bf16.msra.mxu0 %v820
    %844 = vmatmul.bf16.gmra.mxu0 %v760
    %v845 = vpop.f32.mrf.mxu0
    %v846 = vadd.f32 %v786, %v845
    %v847 = vpop.f32.mrf.mxu0
    %v848 = vadd.f32 %v786, %v847
    %849 = vmatmul.bf16.gmra.mxu0 %v761
    %v850 = vpop.f32.mrf.mxu0
    %v851 = vadd.f32 %v786, %v850
    %v852 = vpop.f32.mrf.mxu0
    %v853 = vadd.f32 %v786, %v852
    %854 = vmatmul.bf16.gmra.mxu0 %v762
    %v855 = vpop.f32.mrf.mxu0
    %v856 = vadd.f32 %v786, %v855
    %v857 = vpop.f32.mrf.mxu0
    %v858 = vadd.f32 %v786, %v857
    %859 = vmatmul.bf16.gmra.mxu0 %v763
    %v860 = vpop.f32.mrf.mxu0
    %v861 = vadd.f32 %v786, %v860
    %v862 = vpop.f32.mrf.mxu0
    %v863 = vadd.f32 %v786, %v862
    %864 = vmatmul.bf16.gmra.mxu0 %v764
    %v865 = vpop.f32.mrf.mxu0
    %v866 = vadd.f32 %v786, %v865
    %v867 = vpop.f32.mrf.mxu0
    %v868 = vadd.f32 %v786, %v867
    %869 = vmatmul.bf16.gmra.mxu0 %v765
    %v870 = vpop.f32.mrf.mxu0
    %v871 = vadd.f32 %v786, %v870
    %v872 = vpop.f32.mrf.mxu0
    %v873 = vadd.f32 %v786, %v872
    %874 = vmatmul.bf16.gmra.mxu0 %v766
    %v875 = vpop.f32.mrf.mxu0
    %v876 = vadd.f32 %v786, %v875
    %v877 = vpop.f32.mrf.mxu0
    %v878 = vadd.f32 %v786, %v877
    %879 = vmatmul.bf16.gmra.mxu0 %v767
    %v880 = vpop.f32.mrf.mxu0
    %v881 = vadd.f32 %v786, %v880
    %v882 = vpop.f32.mrf.mxu0
    %v883 = vadd.f32 %v786, %v882
    %884 = vdwg.mxu0
    %v885 = vmax.f32 %v846, 0.0
    %v886 = vmax.f32 %v848, 0.0
    %v887 = vmax.f32 %v851, 0.0
    %v888 = vmax.f32 %v853, 0.0
    %v889 = vmax.f32 %v856, 0.0
    %v890 = vmax.f32 %v858, 0.0
    %v891 = vmax.f32 %v861, 0.0
    %v892 = vmax.f32 %v863, 0.0
    %v893 = vmax.f32 %v866, 0.0
    %v894 = vmax.f32 %v868, 0.0
    %v895 = vmax.f32 %v871, 0.0
    %v896 = vmax.f32 %v873, 0.0
    %v897 = vmax.f32 %v876, 0.0
    %v898 = vmax.f32 %v878, 0.0
    %v899 = vmax.f32 %v881, 0.0
    %v900 = vmax.f32 %v883, 0.0
    %v901 = vpack.c.bf16 %v886, %v885
    %v902 = vpack.c.bf16 %v888, %v887
    %v903 = vpack.c.bf16 %v890, %v889
    %v904 = vpack.c.bf16 %v892, %v891
    %v905 = vpack.c.bf16 %v894, %v893
    %v906 = vpack.c.bf16 %v896, %v895
    %v907 = vpack.c.bf16 %v898, %v897
    %v908 = vpack.c.bf16 %v900, %v899
    %v909 = vld [vmem:[#allocation13] sm:$0xf]
    %v910 = vld [vmem:[#allocation13 + $0x4] sm:$0xf]
    %v911 = vld [vmem:[#allocation13 + $0x8] sm:$0xf]
    %v912 = vld [vmem:[#allocation13 + $0xc] sm:$0xf]
    %v913 = vld [vmem:[#allocation13 + $0x10] sm:$0xf]
    %v914 = vld [vmem:[#allocation13 + $0x14] sm:$0xf]
    %v915 = vld [vmem:[#allocation13 + $0x18] sm:$0xf]
    %v916 = vld [vmem:[#allocation13 + $0x1c] sm:$0xf]
    %v917 = vld [vmem:[#allocation13 + $0x20] sm:$0xf]
    %v918 = vld [vmem:[#allocation13 + $0x24] sm:$0xf]
    %v919 = vld [vmem:[#allocation13 + $0x28] sm:$0xf]
    %v920 = vld [vmem:[#allocation13 + $0x2c] sm:$0xf]
    %v921 = vld [vmem:[#allocation13 + $0x30] sm:$0xf]
    %v922 = vld [vmem:[#allocation13 + $0x34] sm:$0xf]
    %v923 = vld [vmem:[#allocation13 + $0x38] sm:$0xf]
    %v924 = vld [vmem:[#allocation13 + $0x3c] sm:$0xf]
    %v925 = vld [vmem:[%s11] sm:$0x1]
    %v927 = vperm.slane %v925, 0
    %v945 = vunpack.c.l.b16 %v909
    %v946 = vunpack.c.l.b16 %v910
    %v947 = vunpack.c.l.b16 %v911
    %v948 = vunpack.c.l.b16 %v912
    %v949 = vunpack.c.l.b16 %v913
    %v950 = vunpack.c.l.b16 %v914
    %v951 = vunpack.c.l.b16 %v915
    %v952 = vunpack.c.l.b16 %v916
    %v953 = vunpack.c.l.b16 %v917
    %v954 = vunpack.c.l.b16 %v918
    %v955 = vunpack.c.l.b16 %v919
    %v956 = vunpack.c.l.b16 %v920
    %v957 = vunpack.c.l.b16 %v921
    %v958 = vunpack.c.l.b16 %v922
    %v959 = vunpack.c.l.b16 %v923
    %v960 = vunpack.c.l.b16 %v924
    %v961 = vpack.c.b16 %v946, %v945
    %v962 = vpack.c.b16 %v948, %v947
    %v963 = vpack.c.b16 %v950, %v949
    %v964 = vpack.c.b16 %v952, %v951
    %v965 = vpack.c.b16 %v954, %v953
    %v966 = vpack.c.b16 %v956, %v955
    %v967 = vpack.c.b16 %v958, %v957
    %v968 = vpack.c.b16 %v960, %v959
    %977 = vmatpush.bf16.msra.mxu0 %v968
    %978 = vmatpush.bf16.msra.mxu0 %v967
    %979 = vmatpush.bf16.msra.mxu0 %v966
    %980 = vmatpush.bf16.msra.mxu0 %v965
    %981 = vmatpush.bf16.msra.mxu0 %v964
    %982 = vmatpush.bf16.msra.mxu0 %v963
    %983 = vmatpush.bf16.msra.mxu0 %v962
    %984 = vmatpush.bf16.msra.mxu0 %v961
    %985 = vmatmul.bf16.gmra.mxu0 %v901
    %v986 = vpop.f32.mrf.mxu0
    %v987 = vadd.f32 %v927, %v986
    %v988 = vpop.f32.mrf.mxu0
    %v989 = vadd.f32 %v927, %v988
    %990 = vmatmul.bf16.gmra.mxu0 %v902
    %v991 = vpop.f32.mrf.mxu0
    %v992 = vadd.f32 %v927, %v991
    %v993 = vpop.f32.mrf.mxu0
    %v994 = vadd.f32 %v927, %v993
    %995 = vmatmul.bf16.gmra.mxu0 %v903
    %v996 = vpop.f32.mrf.mxu0
    %v997 = vadd.f32 %v927, %v996
    %v998 = vpop.f32.mrf.mxu0
    %v999 = vadd.f32 %v927, %v998
    %1000 = vmatmul.bf16.gmra.mxu0 %v904
    %v1001 = vpop.f32.mrf.mxu0
    %v1002 = vadd.f32 %v927, %v1001
    %v1003 = vpop.f32.mrf.mxu0
    %v1004 = vadd.f32 %v927, %v1003
    %1005 = vmatmul.bf16.gmra.mxu0 %v905
    %v1006 = vpop.f32.mrf.mxu0
    %v1007 = vadd.f32 %v927, %v1006
    %v1008 = vpop.f32.mrf.mxu0
    %v1009 = vadd.f32 %v927, %v1008
    %1010 = vmatmul.bf16.gmra.mxu0 %v906
    %v1011 = vpop.f32.mrf.mxu0
    %v1012 = vadd.f32 %v927, %v1011
    %v1013 = vpop.f32.mrf.mxu0
    %v1014 = vadd.f32 %v927, %v1013
    %1015 = vmatmul.bf16.gmra.mxu0 %v907
    %v1016 = vpop.f32.mrf.mxu0
    %v1017 = vadd.f32 %v927, %v1016
    %v1018 = vpop.f32.mrf.mxu0
    %v1019 = vadd.f32 %v927, %v1018
    %1020 = vmatmul.bf16.gmra.mxu0 %v908
    %v1021 = vpop.f32.mrf.mxu0
    %v1022 = vadd.f32 %v927, %v1021
    %v1023 = vpop.f32.mrf.mxu0
    %v1024 = vadd.f32 %v927, %v1023
    %1025 = vdwg.mxu0
    %1026 = vst [vmem:[#allocation15] sm:$0xff] %v987
    %1027 = vst [vmem:[#allocation15 + $0x8] sm:$0xff] %v989
    %1028 = vst [vmem:[#allocation15 + $0x10] sm:$0xff] %v992
    %1029 = vst [vmem:[#allocation15 + $0x18] sm:$0xff] %v994
    %1030 = vst [vmem:[#allocation15 + $0x20] sm:$0xff] %v997
    %1031 = vst [vmem:[#allocation15 + $0x28] sm:$0xff] %v999
    %1032 = vst [vmem:[#allocation15 + $0x30] sm:$0xff] %v1002
    %1033 = vst [vmem:[#allocation15 + $0x38] sm:$0xff] %v1004
    %1034 = vst [vmem:[#allocation15 + $0x40] sm:$0xff] %v1007
    %1035 = vst [vmem:[#allocation15 + $0x48] sm:$0xff] %v1009
    %1036 = vst [vmem:[#allocation15 + $0x50] sm:$0xff] %v1012
    %1037 = vst [vmem:[#allocation15 + $0x58] sm:$0xff] %v1014
    %1038 = vst [vmem:[#allocation15 + $0x60] sm:$0xff] %v1017
    %1039 = vst [vmem:[#allocation15 + $0x68] sm:$0xff] %v1019
    %1040 = vst [vmem:[#allocation15 + $0x70] sm:$0xff] %v1022
    %1041 = vst [vmem:[#allocation15 + $0x78] sm:$0xff] %v1024
    // Predicated region
    $region74: #{tpu_custom_call.1} parent=1 // pred_check
      _
    $region75: #{tpu_custom_call.1} parent=1 // pred_check_branch
      %1043 = sbr.rel (0) target = $region77
    $region76: #{tpu_custom_call.1} parent=1 // pred_region
      %1045 = vsyncadd [#allocation6], 0
      %s1046 = sshll.u32 [#allocation15], 4
      %s1047 = int_to_ptr.vmem [resolvable:$true] %s1046
      %s1048 = sshll.u32 %s12, 4
      %s1049 = int_to_ptr.hbm [resolvable:$true] %s1048
      %1054 = dma.vmem_to_hbm [thread:$0]  %s1047, 2048, %s1049, [#allocation6], 128, 128, 8
    $region77: #{tpu_custom_call.1} parent=1 // pred_fallthru
      _
    // Predicated region
    $region78: #{tpu_custom_call.1} parent=1 // pred_check
      _
    $region79: #{tpu_custom_call.1} parent=1 // pred_check_branch
      %1056 = sbr.rel (0) target = $region81
    $region80: #{tpu_custom_call.1} parent=1 // pred_region
      %1058 = dma.done [#allocation6], 2048
    $region81: #{tpu_custom_call.1} parent=1 // pred_fallthru
      _
    %1059 = vsyncpa [#allocation5], 1
    %1060 = vsyncpa [#allocation8], 1
    %1061 = vsyncpa [#allocation11], 1
    %1062 = vsyncpa [#allocation14], 1
    %1063 = vsyncpa [#allocation6], 1

</llo_original>
